<compile_context>
chip_gen: v6e
topology: v6e:2x2x1
jax: 0.10.0
libtpu: 0.0.40
codegen_flags: <defaults>
</compile_context>

<pallas_src>
import jax
import jax.numpy as jnp
from jax.experimental import pallas as pl
from jax.experimental.pallas import tpu as pltpu

KSIZE = 3
DIL = 2
STRIDE = 5
PAD = 2


# --------------------------------------------------------------------------
# Fused kernel: one batch element per grid step.
#   taps_ref : (1, OH, OW*9*Cin)          9 dilated taps, lane-concatenated
#   wbd_ref  : (OW*9*Cin, Cout*OW)        block-diagonal down weights
#   bdown_ref: (1, Cout*OW)               down bias, pre-broadcast over OW
#   bup_ref  : (1, Cout*OW2)              up bias, pre-broadcast over OW2
#   bmat_ref : (Cout*OW, KSIZE*Cout*OW2)  up weights fused with column placement
#   pht_ref  : (KSIZE, OH2, OH)           0/1 row-placement matrices
#   m_ref    : (1, Cout, OH, OW)          m_img  (NCHW)
#   pre_ref  : (1, Cout, OH2, OW2)        pre_img (NCHW)
# --------------------------------------------------------------------------
def _fused_kernel(taps_ref, wbd_ref, bdown_ref, bup_ref, bmat_ref, pht_ref,
                  m_ref, pre_ref):
    _, cout, oh, ow = m_ref.shape
    _, cout_up, oh2, ow2 = pre_ref.shape
    ksize = pht_ref.shape[0]

    # ---- down: the whole strided dilated conv is ONE MXU matmul ----------
    # m2[iy, co*OW + ix] = m_img[co, iy, ix]   (bias included)
    m2 = jnp.dot(taps_ref[0], wbd_ref[...],
                 preferred_element_type=jnp.float32) + bdown_ref[...]
    for co in range(cout):
        m_ref[0, co] = m2[:, co * ow:(co + 1) * ow]

    # ---- up: ConvTranspose2d as two placement matmuls ---------------------
    # c[iy, kh*Cout*OW2 + co*OW2 + ox] = sum_{ci,ix,kw} m2 * w_up * Pw
    c = jnp.dot(m2, bmat_ref[...], preferred_element_type=jnp.float32)
    blk = cout_up * ow2
    pre = jnp.dot(pht_ref[0], c[:, :blk], preferred_element_type=jnp.float32)
    for kh in range(1, ksize):
        pre = pre + jnp.dot(pht_ref[kh], c[:, kh * blk:(kh + 1) * blk],
                            preferred_element_type=jnp.float32)
    pre = pre + bup_ref[...]
    # pre[oy, co*OW2 + ox] = pre_img[co, oy, ox]
    for co in range(cout_up):
        pre_ref[0, co] = pre[:, co * ow2:(co + 1) * ow2]


# --------------------------------------------------------------------------
# Wrapper: small, input-independent weight/placement matrices are built in
# plain JAX (exact element-wise construction); all compute runs in the single
# fused Pallas kernel.
# --------------------------------------------------------------------------
def measure_net_forward(x, params):
    w_down = params["w_down"]   # (Cout, Cin, 3, 3)      torch Conv2d layout
    b_down = params["b_down"]   # (Cout,)
    w_up = params["w_up"]       # (Cin_up, Cout_up, 3, 3) torch ConvTranspose2d layout
    b_up = params["b_up"]       # (Cout_up,)

    n, cin, h, w = x.shape
    cout = w_down.shape[0]
    cin_up, cout_up = w_up.shape[0], w_up.shape[1]
    # torch forward requires cin_up == cout (up is applied to m_img).

    oh = (h + 2 * PAD - DIL * (KSIZE - 1) - 1) // STRIDE + 1
    ow = (w + 2 * PAD - DIL * (KSIZE - 1) - 1) // STRIDE + 1
    oh2 = (oh - 1) * STRIDE - 2 * PAD + DIL * (KSIZE - 1) + 1
    ow2 = (ow - 1) * STRIDE - 2 * PAD + DIL * (KSIZE - 1) + 1
    ntap = KSIZE * KSIZE * cin          # 9 * Cin taps per output pixel

    # --- layout glue (XLA): only the 9 used taps, lane-concatenated --------
    x_pad = jnp.pad(x, ((0, 0), (0, 0), (PAD, PAD), (PAD, PAD)))
    taps = [x_pad[:, :,
                  kh * DIL: kh * DIL + (oh - 1) * STRIDE + 1: STRIDE,
                  kw * DIL: kw * DIL + (ow - 1) * STRIDE + 1: STRIDE]
            for kh in range(KSIZE) for kw in range(KSIZE)]
    taps = jnp.stack(taps, axis=1)                           # (N, 9, Cin, OH, OW)
    taps_r = taps.transpose(0, 3, 4, 1, 2).reshape(n, oh, ow * ntap)
    # column layout: ix*(9*Cin) + (kh*3+kw)*Cin + ci

    # --- derived weight matrices (tiny, exact) ------------------------------
    # Down: block-diagonal so the whole conv is one matmul with rows = iy.
    w1 = w_down.transpose(2, 3, 1, 0).reshape(ntap, cout)        # [t, co]
    eye_ow = jnp.eye(ow, dtype=x.dtype)
    wbd = (eye_ow[:, None, None, :] * w1[None, :, :, None]
           ).reshape(ow * ntap, cout * ow)                       # [(ix,t),(co,ix')]
    b_down_row = jnp.repeat(b_down, ow)[None, :]                 # (1, Cout*OW)
    b_up_row = jnp.repeat(b_up, ow2)[None, :]                    # (1, Cout_up*OW2)

    # 0/1 placement matrices:  oy = iy*S - P + kh*D,  ox = ix*S - P + kw*D
    kk = jnp.arange(KSIZE)[:, None, None]
    ph = (jnp.arange(oh2)[None, None, :] ==
          (jnp.arange(oh)[None, :, None] * STRIDE - PAD + kk * DIL)).astype(x.dtype)
    pht = ph.transpose(0, 2, 1)                                  # (K, OH2, OH)
    pw = (jnp.arange(ow2)[None, None, :] ==
          (jnp.arange(ow)[None, :, None] * STRIDE - PAD + kk * DIL)).astype(x.dtype)
    # bmat[(ci,ix), (kh,co,ox)] = sum_kw w_up[ci,co,kh,kw] * pw[kw,ix,ox]
    bmat = (w_up.transpose(0, 2, 1, 3)[:, None, :, :, :, None] *
            pw.transpose(1, 0, 2)[None, :, None, None, :, :]
            ).sum(axis=4).reshape(cin_up * ow, KSIZE * cout_up * ow2)

    m_img, pre_img = pl.pallas_call(
        _fused_kernel,
        grid=(n,),
        in_specs=[
            pl.BlockSpec((1, oh, ow * ntap), lambda b: (b, 0, 0)),
            pl.BlockSpec((ow * ntap, cout * ow), lambda b: (0, 0)),
            pl.BlockSpec((1, cout * ow), lambda b: (0, 0)),
            pl.BlockSpec((1, cout_up * ow2), lambda b: (0, 0)),
            pl.BlockSpec((cin_up * ow, KSIZE * cout_up * ow2), lambda b: (0, 0)),
            pl.BlockSpec((KSIZE, oh2, oh), lambda b: (0, 0, 0)),
        ],
        out_specs=[
            pl.BlockSpec((1, cout, oh, ow), lambda b: (b, 0, 0, 0)),
            pl.BlockSpec((1, cout_up, oh2, ow2), lambda b: (b, 0, 0, 0)),
        ],
        out_shape=[
            jax.ShapeDtypeStruct((n, cout, oh, ow), jnp.float32),
            jax.ShapeDtypeStruct((n, cout_up, oh2, ow2), jnp.float32),
        ],
        compiler_params=pltpu.CompilerParams(
            dimension_semantics=("parallel",)),   # batch across TCs (v7x megacore)
    )(taps_r, wbd, b_down_row, b_up_row, bmat, pht)

    return m_img, pre_img


# --------------------------------------------------------------------------
# Pure-JAX reference (XLA convolutions) for a correctness check.
# --------------------------------------------------------------------------
def measure_net_reference(x, params):
    dn = ("NCHW", "OIHW", "NCHW")
    m_ref = jax.lax.conv_general_dilated(
        x, params["w_down"], window_strides=(STRIDE, STRIDE),
        padding=((PAD, PAD), (PAD, PAD)), rhs_dilation=(DIL, DIL),
        dimension_numbers=dn) + params["b_down"][None, :, None, None]
    w_up_conv = jnp.flip(params["w_up"], axis=(2, 3)).transpose(1, 0, 2, 3)
    pad2 = DIL * (KSIZE - 1) - PAD
    p_ref = jax.lax.conv_general_dilated(
        m_ref, w_up_conv, window_strides=(1, 1),
        padding=((pad2, pad2), (pad2, pad2)),
        lhs_dilation=(STRIDE, STRIDE), rhs_dilation=(DIL, DIL),
        dimension_numbers=dn) + params["b_up"][None, :, None, None]
    return m_ref, p_ref


if __name__ == "__main__":
    N, C, H, W = 2, 4, 16, 16          # in_channels == out_channels == 4
    key = jax.random.PRNGKey(0)
    k1, k2, k3, k4, k5 = jax.random.split(key, 5)
    x = jax.random.normal(k1, (N, C, H, W), jnp.float32)
    params = {
        "w_down": jax.random.normal(k2, (C, C, KSIZE, KSIZE), jnp.float32) * 0.2,
        "b_down": jax.random.normal(k3, (C,), jnp.float32) * 0.1,
        "w_up":   jax.random.normal(k4, (C, C, KSIZE, KSIZE), jnp.float32) * 0.2,
        "b_up":   jax.random.normal(k5, (C,), jnp.float32) * 0.1,
    }

    m_img, pre_img = jax.jit(measure_net_forward)(x, params)
    jax.block_until_ready((m_img, pre_img))

    m_ref, p_ref = measure_net_reference(x, params)
    assert m_img.shape == (N, C, 4, 4), m_img.shape
    assert pre_img.shape == (N, C, 16, 16), pre_img.shape
    assert jnp.allclose(m_img, m_ref, atol=1e-3, rtol=1e-3), \
        float(jnp.abs(m_img - m_ref).max())
    assert jnp.allclose(pre_img, p_ref, atol=1e-3, rtol=1e-3), \
        float(jnp.abs(pre_img - p_ref).max())

    print("KERNEL_OK")
</pallas_src>

<mosaic_0001>
module attributes {stable_mosaic.version = 11 : i64} {
  func.func @_fused_kernel(%arg0: i32, %arg1: memref<1x4x144xf32, #tpu.memory_space<vmem>>, %arg2: memref<144x16xf32, #tpu.memory_space<vmem>>, %arg3: memref<1x16xf32, #tpu.memory_space<vmem>>, %arg4: memref<1x64xf32, #tpu.memory_space<vmem>>, %arg5: memref<16x192xf32, #tpu.memory_space<vmem>>, %arg6: memref<3x16x4xf32, #tpu.memory_space<vmem>>, %arg7: memref<1x4x4x4xf32, #tpu.memory_space<vmem>>, %arg8: memref<1x4x16x16xf32, #tpu.memory_space<vmem>>) attributes {dimension_semantics = [#tpu.dimension_semantics<parallel>], iteration_bounds = array<i64: 2>, scalar_prefetch = 0 : i64, scratch_operands = 0 : i64, tpu.core_type = #tpu.core_type<tc>, window_params = [{transform_indices = @transform_0, window_bounds = array<i64: 1, 4, 144>}, {pipeline_mode = #tpu.pipeline_mode<synchronous>, transform_indices = @transform_1, window_bounds = array<i64: 144, 16>}, {pipeline_mode = #tpu.pipeline_mode<synchronous>, transform_indices = @transform_2, window_bounds = array<i64: 1, 16>}, {pipeline_mode = #tpu.pipeline_mode<synchronous>, transform_indices = @transform_3, window_bounds = array<i64: 1, 64>}, {pipeline_mode = #tpu.pipeline_mode<synchronous>, transform_indices = @transform_4, window_bounds = array<i64: 16, 192>}, {pipeline_mode = #tpu.pipeline_mode<synchronous>, transform_indices = @transform_5, window_bounds = array<i64: 3, 16, 4>}, {transform_indices = @transform_6, window_bounds = array<i64: 1, 4, 4, 4>}, {transform_indices = @transform_7, window_bounds = array<i64: 1, 4, 16, 16>}]} {
    %c0 = arith.constant 0 : index
    %c0_0 = arith.constant 0 : index
    %c0_1 = arith.constant 0 : index
    %0 = vector.load %arg1[%c0, %c0_0, %c0_1] : memref<1x4x144xf32, #tpu.memory_space<vmem>>, vector<1x4x144xf32>
    %1 = vector.shape_cast %0 : vector<1x4x144xf32> to vector<4x144xf32>
    %c0_2 = arith.constant 0 : index
    %c0_3 = arith.constant 0 : index
    %2 = vector.load %arg2[%c0_2, %c0_3] : memref<144x16xf32, #tpu.memory_space<vmem>>, vector<144x16xf32>
    %cst = arith.constant dense<0.000000e+00> : vector<4x16xf32>
    %3 = tpu.matmul %1, %2, %cst {dimension_numbers = #tpu.dot_dimension_numbers<[1], [0], [0], [1], [0, 0, 1, 1], [], []>} : vector<4x144xf32>, vector<144x16xf32>, vector<4x16xf32> -> vector<4x16xf32>
    %c0_4 = arith.constant 0 : index
    %c0_5 = arith.constant 0 : index
    %4 = vector.load %arg3[%c0_4, %c0_5] : memref<1x16xf32, #tpu.memory_space<vmem>>, vector<1x16xf32>
    %5 = vector.broadcast %4 : vector<1x16xf32> to vector<4x16xf32>
    %6 = arith.addf %3, %5 : vector<4x16xf32>
    %7 = vector.extract_strided_slice %6 {offsets = [0, 0], sizes = [4, 4], strides = [1, 1]} : vector<4x16xf32> to vector<4x4xf32>
    %c0_6 = arith.constant 0 : index
    %c0_7 = arith.constant 0 : index
    %c0_8 = arith.constant 0 : index
    %c0_9 = arith.constant 0 : index
    %8 = vector.load %arg7[%c0_6, %c0_7, %c0_8, %c0_9] : memref<1x4x4x4xf32, #tpu.memory_space<vmem>>, vector<1x1x4x4xf32>
    %9 = vector.shape_cast %8 : vector<1x1x4x4xf32> to vector<4x4xf32>
    %10 = vector.shape_cast %7 : vector<4x4xf32> to vector<1x1x4x4xf32>
    tpu.vector_store %arg7[%c0_6, %c0_7, %c0_8, %c0_9], %10 {strides = array<i32>} : memref<1x4x4x4xf32, #tpu.memory_space<vmem>>, vector<1x1x4x4xf32>,
    %11 = vector.extract_strided_slice %6 {offsets = [0, 4], sizes = [4, 4], strides = [1, 1]} : vector<4x16xf32> to vector<4x4xf32>
    %c0_10 = arith.constant 0 : index
    %c1 = arith.constant 1 : index
    %c0_11 = arith.constant 0 : index
    %c0_12 = arith.constant 0 : index
    %12 = vector.load %arg7[%c0_10, %c1, %c0_11, %c0_12] : memref<1x4x4x4xf32, #tpu.memory_space<vmem>>, vector<1x1x4x4xf32>
    %13 = vector.shape_cast %12 : vector<1x1x4x4xf32> to vector<4x4xf32>
    %14 = vector.shape_cast %11 : vector<4x4xf32> to vector<1x1x4x4xf32>
    tpu.vector_store %arg7[%c0_10, %c1, %c0_11, %c0_12], %14 {strides = array<i32>} : memref<1x4x4x4xf32, #tpu.memory_space<vmem>>, vector<1x1x4x4xf32>,
    %15 = vector.extract_strided_slice %6 {offsets = [0, 8], sizes = [4, 4], strides = [1, 1]} : vector<4x16xf32> to vector<4x4xf32>
    %c0_13 = arith.constant 0 : index
    %c2 = arith.constant 2 : index
    %c0_14 = arith.constant 0 : index
    %c0_15 = arith.constant 0 : index
    %16 = vector.load %arg7[%c0_13, %c2, %c0_14, %c0_15] : memref<1x4x4x4xf32, #tpu.memory_space<vmem>>, vector<1x1x4x4xf32>
    %17 = vector.shape_cast %16 : vector<1x1x4x4xf32> to vector<4x4xf32>
    %18 = vector.shape_cast %15 : vector<4x4xf32> to vector<1x1x4x4xf32>
    tpu.vector_store %arg7[%c0_13, %c2, %c0_14, %c0_15], %18 {strides = array<i32>} : memref<1x4x4x4xf32, #tpu.memory_space<vmem>>, vector<1x1x4x4xf32>,
    %19 = vector.extract_strided_slice %6 {offsets = [0, 12], sizes = [4, 4], strides = [1, 1]} : vector<4x16xf32> to vector<4x4xf32>
    %c0_16 = arith.constant 0 : index
    %c3 = arith.constant 3 : index
    %c0_17 = arith.constant 0 : index
    %c0_18 = arith.constant 0 : index
    %20 = vector.load %arg7[%c0_16, %c3, %c0_17, %c0_18] : memref<1x4x4x4xf32, #tpu.memory_space<vmem>>, vector<1x1x4x4xf32>
    %21 = vector.shape_cast %20 : vector<1x1x4x4xf32> to vector<4x4xf32>
    %22 = vector.shape_cast %19 : vector<4x4xf32> to vector<1x1x4x4xf32>
    tpu.vector_store %arg7[%c0_16, %c3, %c0_17, %c0_18], %22 {strides = array<i32>} : memref<1x4x4x4xf32, #tpu.memory_space<vmem>>, vector<1x1x4x4xf32>,
    %c0_19 = arith.constant 0 : index
    %c0_20 = arith.constant 0 : index
    %23 = vector.load %arg5[%c0_19, %c0_20] : memref<16x192xf32, #tpu.memory_space<vmem>>, vector<16x192xf32>
    %cst_21 = arith.constant dense<0.000000e+00> : vector<4x192xf32>
    %24 = tpu.matmul %6, %23, %cst_21 {dimension_numbers = #tpu.dot_dimension_numbers<[1], [0], [0], [1], [0, 0, 1, 1], [], []>} : vector<4x16xf32>, vector<16x192xf32>, vector<4x192xf32> -> vector<4x192xf32>
    %c0_22 = arith.constant 0 : index
    %c0_23 = arith.constant 0 : index
    %c0_24 = arith.constant 0 : index
    %25 = vector.load %arg6[%c0_22, %c0_23, %c0_24] : memref<3x16x4xf32, #tpu.memory_space<vmem>>, vector<1x16x4xf32>
    %26 = vector.shape_cast %25 : vector<1x16x4xf32> to vector<16x4xf32>
    %27 = vector.extract_strided_slice %24 {offsets = [0, 0], sizes = [4, 64], strides = [1, 1]} : vector<4x192xf32> to vector<4x64xf32>
    %cst_25 = arith.constant dense<0.000000e+00> : vector<16x64xf32>
    %28 = tpu.matmul %26, %27, %cst_25 {dimension_numbers = #tpu.dot_dimension_numbers<[1], [0], [0], [1], [0, 0, 1, 1], [], []>} : vector<16x4xf32>, vector<4x64xf32>, vector<16x64xf32> -> vector<16x64xf32>
    %c1_26 = arith.constant 1 : index
    %c0_27 = arith.constant 0 : index
    %c0_28 = arith.constant 0 : index
    %29 = vector.load %arg6[%c1_26, %c0_27, %c0_28] : memref<3x16x4xf32, #tpu.memory_space<vmem>>, vector<1x16x4xf32>
    %30 = vector.shape_cast %29 : vector<1x16x4xf32> to vector<16x4xf32>
    %31 = vector.extract_strided_slice %24 {offsets = [0, 64], sizes = [4, 64], strides = [1, 1]} : vector<4x192xf32> to vector<4x64xf32>
    %cst_29 = arith.constant dense<0.000000e+00> : vector<16x64xf32>
    %32 = tpu.matmul %30, %31, %cst_29 {dimension_numbers = #tpu.dot_dimension_numbers<[1], [0], [0], [1], [0, 0, 1, 1], [], []>} : vector<16x4xf32>, vector<4x64xf32>, vector<16x64xf32> -> vector<16x64xf32>
    %33 = arith.addf %28, %32 : vector<16x64xf32>
    %c2_30 = arith.constant 2 : index
    %c0_31 = arith.constant 0 : index
    %c0_32 = arith.constant 0 : index
    %34 = vector.load %arg6[%c2_30, %c0_31, %c0_32] : memref<3x16x4xf32, #tpu.memory_space<vmem>>, vector<1x16x4xf32>
    %35 = vector.shape_cast %34 : vector<1x16x4xf32> to vector<16x4xf32>
    %36 = vector.extract_strided_slice %24 {offsets = [0, 128], sizes = [4, 64], strides = [1, 1]} : vector<4x192xf32> to vector<4x64xf32>
    %cst_33 = arith.constant dense<0.000000e+00> : vector<16x64xf32>
    %37 = tpu.matmul %35, %36, %cst_33 {dimension_numbers = #tpu.dot_dimension_numbers<[1], [0], [0], [1], [0, 0, 1, 1], [], []>} : vector<16x4xf32>, vector<4x64xf32>, vector<16x64xf32> -> vector<16x64xf32>
    %38 = arith.addf %33, %37 : vector<16x64xf32>
    %c0_34 = arith.constant 0 : index
    %c0_35 = arith.constant 0 : index
    %39 = vector.load %arg4[%c0_34, %c0_35] : memref<1x64xf32, #tpu.memory_space<vmem>>, vector<1x64xf32>
    %40 = vector.broadcast %39 : vector<1x64xf32> to vector<16x64xf32>
    %41 = arith.addf %38, %40 : vector<16x64xf32>
    %42 = vector.extract_strided_slice %41 {offsets = [0, 0], sizes = [16, 16], strides = [1, 1]} : vector<16x64xf32> to vector<16x16xf32>
    %c0_36 = arith.constant 0 : index
    %c0_37 = arith.constant 0 : index
    %c0_38 = arith.constant 0 : index
    %c0_39 = arith.constant 0 : index
    %43 = vector.load %arg8[%c0_36, %c0_37, %c0_38, %c0_39] : memref<1x4x16x16xf32, #tpu.memory_space<vmem>>, vector<1x1x16x16xf32>
    %44 = vector.shape_cast %43 : vector<1x1x16x16xf32> to vector<16x16xf32>
    %45 = vector.shape_cast %42 : vector<16x16xf32> to vector<1x1x16x16xf32>
    tpu.vector_store %arg8[%c0_36, %c0_37, %c0_38, %c0_39], %45 {strides = array<i32>} : memref<1x4x16x16xf32, #tpu.memory_space<vmem>>, vector<1x1x16x16xf32>,
    %46 = vector.extract_strided_slice %41 {offsets = [0, 16], sizes = [16, 16], strides = [1, 1]} : vector<16x64xf32> to vector<16x16xf32>
    %c0_40 = arith.constant 0 : index
    %c1_41 = arith.constant 1 : index
    %c0_42 = arith.constant 0 : index
    %c0_43 = arith.constant 0 : index
    %47 = vector.load %arg8[%c0_40, %c1_41, %c0_42, %c0_43] : memref<1x4x16x16xf32, #tpu.memory_space<vmem>>, vector<1x1x16x16xf32>
    %48 = vector.shape_cast %47 : vector<1x1x16x16xf32> to vector<16x16xf32>
    %49 = vector.shape_cast %46 : vector<16x16xf32> to vector<1x1x16x16xf32>
    tpu.vector_store %arg8[%c0_40, %c1_41, %c0_42, %c0_43], %49 {strides = array<i32>} : memref<1x4x16x16xf32, #tpu.memory_space<vmem>>, vector<1x1x16x16xf32>,
    %50 = vector.extract_strided_slice %41 {offsets = [0, 32], sizes = [16, 16], strides = [1, 1]} : vector<16x64xf32> to vector<16x16xf32>
    %c0_44 = arith.constant 0 : index
    %c2_45 = arith.constant 2 : index
    %c0_46 = arith.constant 0 : index
    %c0_47 = arith.constant 0 : index
    %51 = vector.load %arg8[%c0_44, %c2_45, %c0_46, %c0_47] : memref<1x4x16x16xf32, #tpu.memory_space<vmem>>, vector<1x1x16x16xf32>
    %52 = vector.shape_cast %51 : vector<1x1x16x16xf32> to vector<16x16xf32>
    %53 = vector.shape_cast %50 : vector<16x16xf32> to vector<1x1x16x16xf32>
    tpu.vector_store %arg8[%c0_44, %c2_45, %c0_46, %c0_47], %53 {strides = array<i32>} : memref<1x4x16x16xf32, #tpu.memory_space<vmem>>, vector<1x1x16x16xf32>,
    %54 = vector.extract_strided_slice %41 {offsets = [0, 48], sizes = [16, 16], strides = [1, 1]} : vector<16x64xf32> to vector<16x16xf32>
    %c0_48 = arith.constant 0 : index
    %c3_49 = arith.constant 3 : index
    %c0_50 = arith.constant 0 : index
    %c0_51 = arith.constant 0 : index
    %55 = vector.load %arg8[%c0_48, %c3_49, %c0_50, %c0_51] : memref<1x4x16x16xf32, #tpu.memory_space<vmem>>, vector<1x1x16x16xf32>
    %56 = vector.shape_cast %55 : vector<1x1x16x16xf32> to vector<16x16xf32>
    %57 = vector.shape_cast %54 : vector<16x16xf32> to vector<1x1x16x16xf32>
    tpu.vector_store %arg8[%c0_48, %c3_49, %c0_50, %c0_51], %57 {strides = array<i32>} : memref<1x4x16x16xf32, #tpu.memory_space<vmem>>, vector<1x1x16x16xf32>,
    return
  }
  func.func @transform_0(%arg0: i32) -> (i32, i32, i32) {
    %c0_i32 = arith.constant 0 : i32
    %c0_i32_0 = arith.constant 0 : i32
    %c0_i32_1 = arith.constant 0 : i32
    return %arg0, %c0_i32, %c0_i32_0 : i32, i32, i32
  }
  func.func @transform_1(%arg0: i32) -> (i32, i32) {
    %c0_i32 = arith.constant 0 : i32
    %c0_i32_0 = arith.constant 0 : i32
    %c0_i32_1 = arith.constant 0 : i32
    return %c0_i32, %c0_i32_0 : i32, i32
  }
  func.func @transform_2(%arg0: i32) -> (i32, i32) {
    %c0_i32 = arith.constant 0 : i32
    %c0_i32_0 = arith.constant 0 : i32
    %c0_i32_1 = arith.constant 0 : i32
    return %c0_i32, %c0_i32_0 : i32, i32
  }
  func.func @transform_3(%arg0: i32) -> (i32, i32) {
    %c0_i32 = arith.constant 0 : i32
    %c0_i32_0 = arith.constant 0 : i32
    %c0_i32_1 = arith.constant 0 : i32
    return %c0_i32, %c0_i32_0 : i32, i32
  }
  func.func @transform_4(%arg0: i32) -> (i32, i32) {
    %c0_i32 = arith.constant 0 : i32
    %c0_i32_0 = arith.constant 0 : i32
    %c0_i32_1 = arith.constant 0 : i32
    return %c0_i32, %c0_i32_0 : i32, i32
  }
  func.func @transform_5(%arg0: i32) -> (i32, i32, i32) {
    %c0_i32 = arith.constant 0 : i32
    %c0_i32_0 = arith.constant 0 : i32
    %c0_i32_1 = arith.constant 0 : i32
    %c0_i32_2 = arith.constant 0 : i32
    return %c0_i32, %c0_i32_0, %c0_i32_1 : i32, i32, i32
  }
  func.func @transform_6(%arg0: i32) -> (i32, i32, i32, i32) {
    %c0_i32 = arith.constant 0 : i32
    %c0_i32_0 = arith.constant 0 : i32
    %c0_i32_1 = arith.constant 0 : i32
    %c0_i32_2 = arith.constant 0 : i32
    return %arg0, %c0_i32, %c0_i32_0, %c0_i32_1 : i32, i32, i32, i32
  }
  func.func @transform_7(%arg0: i32) -> (i32, i32, i32, i32) {
    %c0_i32 = arith.constant 0 : i32
    %c0_i32_0 = arith.constant 0 : i32
    %c0_i32_1 = arith.constant 0 : i32
    %c0_i32_2 = arith.constant 0 : i32
    return %arg0, %c0_i32, %c0_i32_0, %c0_i32_1 : i32, i32, i32, i32
  }
}

</mosaic_0001>

<llo_original>
// kernel: mul.22
$region0: #{mul.22}
  %s0 = inlined_call_operand.vmem [shape: f32[3,3,4,4], index: 0, kind: input, shape index: {}]
  %s1 = inlined_call_operand.vmem [shape: f32[36,4], index: 1, kind: output, shape index: {}]
  $region1: #{mul.22} parent=0
    #allocation0 [shape = 'u8[4096]{0}', space=vmem, size = 0x1000, scoped, tag = 'scoped mem for output reshape']
    #allocation1 [shape = 'u8[49152]{0}', space=vmem, size = 0xc000, scoped, tag = 'scoped mem for input reshape']
    %s3 = sshll.u32 1, 4
    %s4 = ssub.s32 %s3, 1
    %s5 = smul.addr 4, 11
    %s6 = scalar_lea.vmem %s0, %s5
    %v7 = vld [vmem:[%s6] sm:%s4]
    %s8 = scalar_lea.vmem [#allocation1], 88
    %9 = vst [vmem:[%s8] sm:%s4] %v7
    %s10 = smul.addr 4, 10
    %s11 = scalar_lea.vmem %s0, %s10
    %v12 = vld [vmem:[%s11] sm:%s4]
    %s13 = scalar_lea.vmem [#allocation1], 80
    %14 = vst [vmem:[%s13] sm:%s4] %v12
    %s15 = smul.addr 4, 9
    %s16 = scalar_lea.vmem %s0, %s15
    %v17 = vld [vmem:[%s16] sm:%s4]
    %s18 = scalar_lea.vmem [#allocation1], 72
    %19 = vst [vmem:[%s18] sm:%s4] %v17
    %s20 = smul.addr 4, 8
    %s21 = scalar_lea.vmem %s0, %s20
    %v22 = vld [vmem:[%s21] sm:%s4]
    %s23 = scalar_lea.vmem [#allocation1], 64
    %24 = vst [vmem:[%s23] sm:%s4] %v22
    %s25 = smul.addr 4, 7
    %s26 = scalar_lea.vmem %s0, %s25
    %v27 = vld [vmem:[%s26] sm:%s4]
    %s28 = scalar_lea.vmem [#allocation1], 56
    %29 = vst [vmem:[%s28] sm:%s4] %v27
    %s30 = smul.addr 4, 6
    %s31 = scalar_lea.vmem %s0, %s30
    %v32 = vld [vmem:[%s31] sm:%s4]
    %s33 = scalar_lea.vmem [#allocation1], 48
    %34 = vst [vmem:[%s33] sm:%s4] %v32
    %s35 = smul.addr 4, 5
    %s36 = scalar_lea.vmem %s0, %s35
    %v37 = vld [vmem:[%s36] sm:%s4]
    %s38 = scalar_lea.vmem [#allocation1], 40
    %39 = vst [vmem:[%s38] sm:%s4] %v37
    %s40 = smul.addr 4, 4
    %s41 = scalar_lea.vmem %s0, %s40
    %v42 = vld [vmem:[%s41] sm:%s4]
    %s43 = scalar_lea.vmem [#allocation1], 32
    %44 = vst [vmem:[%s43] sm:%s4] %v42
    %s45 = smul.addr 4, 3
    %s46 = scalar_lea.vmem %s0, %s45
    %v47 = vld [vmem:[%s46] sm:%s4]
    %s48 = scalar_lea.vmem [#allocation1], 24
    %49 = vst [vmem:[%s48] sm:%s4] %v47
    %s50 = smul.addr 4, 2
    %s51 = scalar_lea.vmem %s0, %s50
    %v52 = vld [vmem:[%s51] sm:%s4]
    %s53 = scalar_lea.vmem [#allocation1], 16
    %54 = vst [vmem:[%s53] sm:%s4] %v52
    %s55 = scalar_lea.vmem %s0, 4
    %v56 = vld [vmem:[%s55] sm:%s4]
    %s57 = scalar_lea.vmem [#allocation1], 8
    %58 = vst [vmem:[%s57] sm:%s4] %v56
    %v59 = vld [vmem:[%s0] sm:%s4]
    %60 = vst [vmem:[#allocation1] sm:%s4] %v59
    %v61 = vld [vmem:[#allocation1] ss:$24 sm:$0xf]
    %vm62 = vcmask 31744
    %63 = vst.msk [vmem:[#allocation0] sm:$0xf] %vm62, %v61
    %s64 = scalar_lea.vmem [#allocation1], 18
    %v65 = vld [vmem:[%s64] ss:$24 sm:$0xf]
    %66 = vrot.lane.b32.xlu0 %v65, 32
    %v67 = vpop.permute.xlu0 %66
    %vm68 = vcmask 294144
    %69 = vst.msk [vmem:[#allocation0] sm:$0xf] %vm68, %v67
    %s70 = scalar_lea.vmem [#allocation1], 17
    %v71 = vld [vmem:[%s70] ss:$24 sm:$0xf]
    %72 = vrot.lane.b32.xlu0 %v71, 28
    %v73 = vpop.permute.xlu0 %72
    %vm74 = vcmask 261344
    %75 = vst.msk [vmem:[#allocation0] sm:$0xf] %vm74, %v73
    %s76 = scalar_lea.vmem [#allocation1], 16
    %v77 = vld [vmem:[%s76] ss:$24 sm:$0xf]
    %78 = vrot.lane.b32.xlu0 %v77, 24
    %v79 = vpop.permute.xlu0 %78
    %vm80 = vcmask 228544
    %81 = vst.msk [vmem:[#allocation0] sm:$0xf] %vm80, %v79
    %s82 = scalar_lea.vmem [#allocation1], 10
    %v83 = vld [vmem:[%s82] ss:$24 sm:$0xf]
    %84 = vrot.lane.b32.xlu0 %v83, 20
    %v85 = vpop.permute.xlu0 %84
    %vm86 = vcmask 195744
    %87 = vst.msk [vmem:[#allocation0] sm:$0xf] %vm86, %v85
    %s88 = scalar_lea.vmem [#allocation1], 9
    %v89 = vld [vmem:[%s88] ss:$24 sm:$0xf]
    %90 = vrot.lane.b32.xlu0 %v89, 16
    %v91 = vpop.permute.xlu0 %90
    %vm92 = vcmask 162944
    %93 = vst.msk [vmem:[#allocation0] sm:$0xf] %vm92, %v91
    %s94 = scalar_lea.vmem [#allocation1], 8
    %v95 = vld [vmem:[%s94] ss:$24 sm:$0xf]
    %96 = vrot.lane.b32.xlu0 %v95, 12
    %v97 = vpop.permute.xlu0 %96
    %vm98 = vcmask 130144
    %99 = vst.msk [vmem:[#allocation0] sm:$0xf] %vm98, %v97
    %s100 = scalar_lea.vmem [#allocation1], 2
    %v101 = vld [vmem:[%s100] ss:$24 sm:$0xf]
    %102 = vrot.lane.b32.xlu0 %v101, 8
    %v103 = vpop.permute.xlu0 %102
    %vm104 = vcmask 97344
    %105 = vst.msk [vmem:[#allocation0] sm:$0xf] %vm104, %v103
    %s106 = scalar_lea.vmem [#allocation1], 1
    %v107 = vld [vmem:[%s106] ss:$24 sm:$0xf]
    %108 = vrot.lane.b32.xlu0 %v107, 4
    %v109 = vpop.permute.xlu0 %108
    %vm110 = vcmask 64544
    %111 = vst.msk [vmem:[#allocation0] sm:$0xf] %vm110, %v109
    %s113 = sshll.u32 1, 4
    %s114 = ssub.s32 %s113, 1
    %v116 = vld [vmem:[#allocation0] sm:%s114]
    %s117 = sshll.u32 1, 4
    %s118 = ssub.s32 %s117, 1
    %119 = vst [vmem:[%s1] sm:%s118] %v116

// kernel: measure_net_forward.1
$region0: #{measure_net_forward.1}
  #allocation0 [shape = 'u32[]', space=smem, size = 0x4, offset = 0x4, fixed_abs, tag = 'smem constant byte address 0x4 - core index']
  #allocation1 [shape = 'u32[144,128]{1,0:T(1,128)}', space=vmem, size = 0x12000, scoped, tag = 'internal scratch']
  %s0 = inlined_call_operand.vmem [shape: f32[2,4,144], index: 0, kind: input, shape index: {}]
  %s1 = inlined_call_operand.vmem [shape: f32[144,16], index: 1, kind: input, shape index: {}]
  %s2 = inlined_call_operand.vmem [shape: f32[1,16], index: 2, kind: input, shape index: {}]
  %s3 = inlined_call_operand.vmem [shape: f32[1,64], index: 3, kind: input, shape index: {}]
  %s4 = inlined_call_operand.vmem [shape: f32[16,192], index: 4, kind: input, shape index: {}]
  %s5 = inlined_call_operand.vmem [shape: f32[3,16,4], index: 5, kind: input, shape index: {}]
  %s6 = inlined_call_operand.hbm [shape: f32[2,4,4,4], index: 6, kind: output, shape index: {0}]
  %s7 = inlined_call_operand.hbm [shape: f32[2,4,16,16], index: 7, kind: output, shape index: {1}]
  %8 = xla_tuple %s6, %s7
  %s9 = sld [smem:[#allocation0]]
  $region65: #{measure_net_forward.1} parent=0
    _
  %s11 = ssub.s32 1, %s9
  %s12 = scalar_select 0, %s11, %s9
  $region1: #{measure_net_forward.1} parent=0
    #allocation2 [shape = 'u8[16384]{0}', space=vmem, size = 0x4000, scoped, tag = 'output window, operand 0']
    #allocation3 [shape = 's32[2]{0}', space=sflag, size = 0x8, scoped, tag = 'scoped memory for measure_net_forward.1']
    #allocation4 [shape = 'u8[65536]{0}', space=vmem, size = 0x10000, scoped, tag = 'output window, operand 1']
    #allocation5 [shape = 's32[2]{0}', space=sflag, size = 0x8, scoped, tag = 'scoped memory for measure_net_forward.1']
    %13 = vsyncpa [#allocation3], 0
    %s14 = scalar_lea.sflag [#allocation3], 1
    %15 = vsyncpa %s14, 0
    %16 = vsyncpa [#allocation5], 0
    %s17 = scalar_lea.sflag [#allocation5], 1
    %18 = vsyncpa %s17, 0
    loop: start=0, step=1, limit=4
    $region2: #{measure_net_forward.1} parent=1 // loop_pre_header
      _
    $region3: #{measure_net_forward.1} parent=1 // loop_header
      %s20 = sphi 0, %s24
      %p21 = scmp.ge.s32.totalorder %s20, 4
      %s30 = sphi 0, %s32
      %s33 = sphi 0, %s30
      %s34 = sphi 0, %s33
      %s50 = sphi 0, %s34
      %s54 = sphi 0, %s54
      %s56 = sphi 0, %s54
      %s57 = sphi 0, %s56
      %s71 = sphi 0, %s57
      %s75 = sphi 0, %s75
      %s77 = sphi 0, %s75
      %s78 = sphi 0, %s77
      %s92 = sphi 0, %s78
      %s96 = sphi 0, %s96
      %s98 = sphi 0, %s96
      %s99 = sphi 0, %s98
      %s113 = sphi 0, %s99
      %s117 = sphi 0, %s117
      %s119 = sphi 0, %s117
      %s120 = sphi 0, %s119
      %s134 = sphi 0, %s120
      %s138 = sphi 0, %s138
      %s140 = sphi 0, %s138
      %s141 = sphi 0, %s140
      %s155 = sphi 0, %s141
      %s161 = sphi 0, %s163
      %s164 = sphi 0, %s161
      %s165 = sphi 0, %s164
      %s181 = sphi 0, %s165
      %s187 = sphi 0, %s189
      %s190 = sphi 0, %s187
      %s191 = sphi 0, %s190
      %s207 = sphi 0, %s191
    $region4: #{measure_net_forward.1} parent=1 // loop_header_branch
      %23 = sbr.rel (%p21) target = $region8
    $region5: #{measure_net_forward.1} parent=1 // loop_body
      %s25 = ssub.s32 %s20, 1
      %s26 = ssub.s32 %s20, 2
      %s27 = sadd.s32 %s20, 1
      %s28 = ssub.s32 %s20, %s27
      %p29 = scmp.eq.s32.totalorder %s28, 0
      %s31 = sadd.s32 %s30, 1
      %s32 = scalar_select %p29, %s30, %s31
      %p35 = pneg %p29
      %p36 = scmp.eq.s32.totalorder %s20, 1
      %p37 = por %p35, %p36
      %p38 = scmp.ne.s32.totalorder %s30, %s33
      %p39 = scmp.eq.s32.totalorder %s20, 0
      %p40 = por %p38, %p39
      %p41 = scmp.ne.s32.totalorder %s30, %s33
      %p42 = scmp.eq.s32.totalorder %s25, 1
      %p43 = por %p41, %p42
      %p44 = scmp.ne.s32.totalorder %s33, %s34
      %p45 = scmp.eq.s32.totalorder %s25, 0
      %p46 = por %p44, %p45
      %p47 = scmp.ne.s32.totalorder %s33, %s34
      %p48 = scmp.eq.s32.totalorder %s26, 1
      %p49 = por %p47, %p48
      %p51 = scmp.ne.s32.totalorder %s34, %s50
      %p52 = scmp.eq.s32.totalorder %s26, 0
      %p53 = por %p51, %p52
      %s55 = sadd.s32 %s54, 1
      %p58 = scmp.eq.s32.totalorder %s20, 1
      %p59 = scmp.ne.s32.totalorder %s54, %s56
      %p60 = scmp.eq.s32.totalorder %s20, 0
      %p61 = por %p59, %p60
      %p62 = scmp.ne.s32.totalorder %s54, %s56
      %p63 = scmp.eq.s32.totalorder %s25, 1
      %p64 = por %p62, %p63
      %p65 = scmp.ne.s32.totalorder %s56, %s57
      %p66 = scmp.eq.s32.totalorder %s25, 0
      %p67 = por %p65, %p66
      %p68 = scmp.ne.s32.totalorder %s56, %s57
      %p69 = scmp.eq.s32.totalorder %s26, 1
      %p70 = por %p68, %p69
      %p72 = scmp.ne.s32.totalorder %s57, %s71
      %p73 = scmp.eq.s32.totalorder %s26, 0
      %p74 = por %p72, %p73
      %s76 = sadd.s32 %s75, 1
      %p79 = scmp.eq.s32.totalorder %s20, 1
      %p80 = scmp.ne.s32.totalorder %s75, %s77
      %p81 = scmp.eq.s32.totalorder %s20, 0
      %p82 = por %p80, %p81
      %p83 = scmp.ne.s32.totalorder %s75, %s77
      %p84 = scmp.eq.s32.totalorder %s25, 1
      %p85 = por %p83, %p84
      %p86 = scmp.ne.s32.totalorder %s77, %s78
      %p87 = scmp.eq.s32.totalorder %s25, 0
      %p88 = por %p86, %p87
      %p89 = scmp.ne.s32.totalorder %s77, %s78
      %p90 = scmp.eq.s32.totalorder %s26, 1
      %p91 = por %p89, %p90
      %p93 = scmp.ne.s32.totalorder %s78, %s92
      %p94 = scmp.eq.s32.totalorder %s26, 0
      %p95 = por %p93, %p94
      %s97 = sadd.s32 %s96, 1
      %p100 = scmp.eq.s32.totalorder %s20, 1
      %p101 = scmp.ne.s32.totalorder %s96, %s98
      %p102 = scmp.eq.s32.totalorder %s20, 0
      %p103 = por %p101, %p102
      %p104 = scmp.ne.s32.totalorder %s96, %s98
      %p105 = scmp.eq.s32.totalorder %s25, 1
      %p106 = por %p104, %p105
      %p107 = scmp.ne.s32.totalorder %s98, %s99
      %p108 = scmp.eq.s32.totalorder %s25, 0
      %p109 = por %p107, %p108
      %p110 = scmp.ne.s32.totalorder %s98, %s99
      %p111 = scmp.eq.s32.totalorder %s26, 1
      %p112 = por %p110, %p111
      %p114 = scmp.ne.s32.totalorder %s99, %s113
      %p115 = scmp.eq.s32.totalorder %s26, 0
      %p116 = por %p114, %p115
      %s118 = sadd.s32 %s117, 1
      %p121 = scmp.eq.s32.totalorder %s20, 1
      %p122 = scmp.ne.s32.totalorder %s117, %s119
      %p123 = scmp.eq.s32.totalorder %s20, 0
      %p124 = por %p122, %p123
      %p125 = scmp.ne.s32.totalorder %s117, %s119
      %p126 = scmp.eq.s32.totalorder %s25, 1
      %p127 = por %p125, %p126
      %p128 = scmp.ne.s32.totalorder %s119, %s120
      %p129 = scmp.eq.s32.totalorder %s25, 0
      %p130 = por %p128, %p129
      %p131 = scmp.ne.s32.totalorder %s119, %s120
      %p132 = scmp.eq.s32.totalorder %s26, 1
      %p133 = por %p131, %p132
      %p135 = scmp.ne.s32.totalorder %s120, %s134
      %p136 = scmp.eq.s32.totalorder %s26, 0
      %p137 = por %p135, %p136
      %s139 = sadd.s32 %s138, 1
      %p142 = scmp.eq.s32.totalorder %s20, 1
      %p143 = scmp.ne.s32.totalorder %s138, %s140
      %p144 = scmp.eq.s32.totalorder %s20, 0
      %p145 = por %p143, %p144
      %p146 = scmp.ne.s32.totalorder %s138, %s140
      %p147 = scmp.eq.s32.totalorder %s25, 1
      %p148 = por %p146, %p147
      %p149 = scmp.ne.s32.totalorder %s140, %s141
      %p150 = scmp.eq.s32.totalorder %s25, 0
      %p151 = por %p149, %p150
      %p152 = scmp.ne.s32.totalorder %s140, %s141
      %p153 = scmp.eq.s32.totalorder %s26, 1
      %p154 = por %p152, %p153
      %p156 = scmp.ne.s32.totalorder %s141, %s155
      %p157 = scmp.eq.s32.totalorder %s26, 0
      %p158 = por %p156, %p157
      %s159 = ssub.s32 %s20, %s27
      %p160 = scmp.eq.s32.totalorder %s159, 0
      %s162 = sadd.s32 %s161, 1
      %s163 = scalar_select %p160, %s161, %s162
      %p166 = pneg %p160
      %p167 = scmp.eq.s32.totalorder %s20, 1
      %p168 = por %p166, %p167
      %p169 = scmp.ne.s32.totalorder %s161, %s164
      %p170 = scmp.eq.s32.totalorder %s20, 0
      %p171 = por %p169, %p170
      %p172 = scmp.ne.s32.totalorder %s161, %s164
      %p173 = scmp.eq.s32.totalorder %s25, 1
      %p174 = por %p172, %p173
      %p175 = scmp.ne.s32.totalorder %s164, %s165
      %p176 = scmp.eq.s32.totalorder %s25, 0
      %p177 = por %p175, %p176
      %p178 = scmp.ne.s32.totalorder %s164, %s165
      %p179 = scmp.eq.s32.totalorder %s26, 1
      %p180 = por %p178, %p179
      %p182 = scmp.ne.s32.totalorder %s165, %s181
      %p183 = scmp.eq.s32.totalorder %s26, 0
      %p184 = por %p182, %p183
      %s185 = ssub.s32 %s20, %s27
      %p186 = scmp.eq.s32.totalorder %s185, 0
      %s188 = sadd.s32 %s187, 1
      %s189 = scalar_select %p186, %s187, %s188
      %p192 = pneg %p186
      %p193 = scmp.eq.s32.totalorder %s20, 1
      %p194 = por %p192, %p193
      %p195 = scmp.ne.s32.totalorder %s187, %s190
      %p196 = scmp.eq.s32.totalorder %s20, 0
      %p197 = por %p195, %p196
      %p198 = scmp.ne.s32.totalorder %s187, %s190
      %p199 = scmp.eq.s32.totalorder %s25, 1
      %p200 = por %p198, %p199
      %p201 = scmp.ne.s32.totalorder %s190, %s191
      %p202 = scmp.eq.s32.totalorder %s25, 0
      %p203 = por %p201, %p202
      %p204 = scmp.ne.s32.totalorder %s190, %s191
      %p205 = scmp.eq.s32.totalorder %s26, 1
      %p206 = por %p204, %p205
      %p208 = scmp.ne.s32.totalorder %s191, %s207
      %p209 = scmp.eq.s32.totalorder %s26, 0
      %p210 = por %p208, %p209
      %p211 = scmp.le.s32.totalorder 1, %s20
      %p212 = scmp.lt.s32.totalorder %s20, 3
      %p213 = pnand %p211, %p212
      %p214 = pneg %p213
      // Predicated region
      $region9: #{measure_net_forward.1} parent=5 // pred_check
        _
      $region10: #{measure_net_forward.1} parent=5 // pred_check_branch
        %216 = sbr.rel (%p213) target = $region12
      $region11: #{measure_net_forward.1} parent=5 // pred_region
        %s217 = ssub.s32 %s20, 1
        // Predicated region
        $region13: #{measure_net_forward.1} parent=11 // pred_check
          %p218 = pneg %p67
        $region14: #{measure_net_forward.1} parent=11 // pred_check_branch
          %220 = sbr.rel (%p218) target = $region16
        $region15: #{measure_net_forward.1} parent=11 // pred_region
          _
        $region16: #{measure_net_forward.1} parent=11 // pred_fallthru
          _
        // Predicated region
        $region17: #{measure_net_forward.1} parent=11 // pred_check
          %p221 = pneg %p88
        $region18: #{measure_net_forward.1} parent=11 // pred_check_branch
          %223 = sbr.rel (%p221) target = $region20
        $region19: #{measure_net_forward.1} parent=11 // pred_region
          _
        $region20: #{measure_net_forward.1} parent=11 // pred_fallthru
          _
        // Predicated region
        $region21: #{measure_net_forward.1} parent=11 // pred_check
          %p224 = pneg %p109
        $region22: #{measure_net_forward.1} parent=11 // pred_check_branch
          %226 = sbr.rel (%p224) target = $region24
        $region23: #{measure_net_forward.1} parent=11 // pred_region
          _
        $region24: #{measure_net_forward.1} parent=11 // pred_fallthru
          _
        // Predicated region
        $region25: #{measure_net_forward.1} parent=11 // pred_check
          %p227 = pneg %p130
        $region26: #{measure_net_forward.1} parent=11 // pred_check_branch
          %229 = sbr.rel (%p227) target = $region28
        $region27: #{measure_net_forward.1} parent=11 // pred_region
          _
        $region28: #{measure_net_forward.1} parent=11 // pred_fallthru
          _
        // Predicated region
        $region29: #{measure_net_forward.1} parent=11 // pred_check
          %p230 = pneg %p151
        $region30: #{measure_net_forward.1} parent=11 // pred_check_branch
          %232 = sbr.rel (%p230) target = $region32
        $region31: #{measure_net_forward.1} parent=11 // pred_region
          _
        $region32: #{measure_net_forward.1} parent=11 // pred_fallthru
          _
      $region12: #{measure_net_forward.1} parent=5 // pred_fallthru
        _
      %p233 = scmp.lt.s32.totalorder %s20, 2
      // Predicated region
      $region33: #{measure_net_forward.1} parent=5 // pred_check
        %p234 = pneg %p233
      $region34: #{measure_net_forward.1} parent=5 // pred_check_branch
        %236 = sbr.rel (%p234) target = $region36
      $region35: #{measure_net_forward.1} parent=5 // pred_region
        // Predicated region
        $region37: #{measure_net_forward.1} parent=35 // pred_check
          %p237 = pneg %p40
        $region38: #{measure_net_forward.1} parent=35 // pred_check_branch
          %239 = sbr.rel (%p237) target = $region40
        $region39: #{measure_net_forward.1} parent=35 // pred_region
          %p240 = scmp.lt.s32.totalorder %s20, 1
          %s241 = scalar_select %p240, %s20, 1
          %s242 = smul.addr %s241, 2
          %s243 = smul.addr %s242, 4
          %s244 = scalar_lea.vmem %s0, %s243
        $region40: #{measure_net_forward.1} parent=35 // pred_fallthru
          _
      $region36: #{measure_net_forward.1} parent=5 // pred_fallthru
        _
      %p245 = scmp.le.s32.totalorder 1, %s20
      %p246 = scmp.lt.s32.totalorder %s20, 3
      %p247 = pnand %p245, %p246
      %p248 = pneg %p247
      // Predicated region
      $region41: #{measure_net_forward.1} parent=5 // pred_check
        _
      $region42: #{measure_net_forward.1} parent=5 // pred_check_branch
        %250 = sbr.rel (%p247) target = $region44
      $region43: #{measure_net_forward.1} parent=5 // pred_region
        %s251 = ssub.s32 %s20, 1
        %p252 = scmp.lt.s32.totalorder %s25, 1
        %s253 = scalar_select %p252, %s25, 1
        %s254 = smul.addr %s253, 2
        %s255 = smul.addr %s254, 4
        %s256 = scalar_lea.vmem %s0, %s255
        %p257 = pneg %p46
        %p258 = pneg %p43
        %p259 = pneg %p67
        %p260 = pneg %p64
        %p261 = pneg %p88
        %p262 = pneg %p85
        %p263 = pneg %p109
        %p264 = pneg %p106
        %p265 = pneg %p130
        %p266 = pneg %p127
        %p267 = pneg %p151
        %p268 = pneg %p148
        %p269 = pneg %p177
        %p270 = pneg %p174
        %s271 = sand.u32 %s164, 1
        %s272 = scalar_lea.sflag [#allocation3], %s271
        %s273 = sand.u32 %s164, 1
        %s274 = smul.addr %s273, 16
        %s275 = scalar_lea.vmem [#allocation2], %s274
        %p276 = pneg %p203
        %p277 = pneg %p200
        %s278 = sand.u32 %s190, 1
        %s279 = scalar_lea.sflag [#allocation5], %s278
        %s280 = sand.u32 %s190, 1
        %s281 = smul.addr %s280, 64
        %s282 = scalar_lea.vmem [#allocation4], %s281
        %p283 = scmp.lt.s32.totalorder %s25, 1
        %s284 = scalar_select %p283, %s25, 1
        %s285 = smul.addr %s284, 2
        %s286 = smul.addr %s285, 4
        %s287 = scalar_lea.vmem %s0, %s286
        %v288 = vld [vmem:[%s287] sm:$0xff]
        %v289 = vld [vmem:[%s1] sm:$0xff]
        %v290 = vld [vmem:[%s1 + $0x8] sm:$0xff]
        %v291 = vld [vmem:[%s1 + $0x10] sm:$0xff]
        %v292 = vld [vmem:[%s1 + $0x18] sm:$0xff]
        %v293 = vld [vmem:[%s1 + $0x20] sm:$0xff]
        %v294 = vld [vmem:[%s1 + $0x28] sm:$0xff]
        %v295 = vld [vmem:[%s1 + $0x30] sm:$0xff]
        %v296 = vld [vmem:[%s1 + $0x38] sm:$0xff]
        %v297 = vld [vmem:[%s1 + $0x40] sm:$0xff]
        %v298 = vld [vmem:[%s1 + $0x48] sm:$0xff]
        %v299 = vld [vmem:[%s1 + $0x50] sm:$0xff]
        %v300 = vld [vmem:[%s1 + $0x58] sm:$0xff]
        %v301 = vld [vmem:[%s1 + $0x60] sm:$0xff]
        %v302 = vld [vmem:[%s1 + $0x68] sm:$0xff]
        %v303 = vld [vmem:[%s1 + $0x70] sm:$0xff]
        %v304 = vld [vmem:[%s1 + $0x78] sm:$0xff]
        %v305 = vld [vmem:[%s1 + $0x80] sm:$0xff]
        %v306 = vld [vmem:[%s1 + $0x88] sm:$0xff]
        %v307 = vld [vmem:[%s2] sm:$0x1]
        %v309 = vlaneseq
        %v310 = vshrl.u32 %v309, 7
        %v311 = vsub.s32 0, %v310
        %v312 = vrot.slane %v307, %v311
        %v315 = vcombine.high %v288, %v288
        %vm316 = vcmask 130048
        %v317 = vsel %vm316, %v315, 0
        %319 = vmatprep.subr.mxu0 0.0
        %320 = vmatpush1.msra.mxu0 %v304
        %321 = vmatprep.subr.mxu0 0.0
        %322 = vmatpush1.msra.mxu0 %v303
        %323 = vmatprep.subr.mxu0 0.0
        %324 = vmatpush1.msra.mxu0 %v302
        %325 = vmatprep.subr.mxu0 0.0
        %326 = vmatpush1.msra.mxu0 %v301
        %327 = vmatprep.subr.mxu0 0.0
        %328 = vmatpush1.msra.mxu0 %v300
        %329 = vmatprep.subr.mxu0 0.0
        %330 = vmatpush1.msra.mxu0 %v299
        %331 = vmatprep.subr.mxu0 0.0
        %332 = vmatpush1.msra.mxu0 %v298
        %333 = vmatprep.subr.mxu0 0.0
        %334 = vmatpush1.msra.mxu0 %v297
        %335 = vmatprep.subr.mxu0 0.0
        %336 = vmatpush1.msra.mxu0 %v296
        %337 = vmatprep.subr.mxu0 0.0
        %338 = vmatpush1.msra.mxu0 %v295
        %339 = vmatprep.subr.mxu0 0.0
        %340 = vmatpush1.msra.mxu0 %v294
        %341 = vmatprep.subr.mxu0 0.0
        %342 = vmatpush1.msra.mxu0 %v293
        %343 = vmatprep.subr.mxu0 0.0
        %344 = vmatpush1.msra.mxu0 %v292
        %345 = vmatprep.subr.mxu0 0.0
        %346 = vmatpush1.msra.mxu0 %v291
        %347 = vmatprep.subr.mxu0 0.0
        %348 = vmatpush1.msra.mxu0 %v290
        %349 = vmatprep.subr.mxu0 0.0
        %350 = vmatpush1.msra.mxu0 %v289
        %351 = vmatprep.subr.mxu0 0.0
        %352 = vmatpush2.msra.mxu0 0.0
        %353 = vmatprep.subr.mxu0 0.0
        %354 = vmatpush2.msra.mxu0 0.0
        %355 = vmatprep.subr.mxu0 0.0
        %356 = vmatpush2.msra.mxu0 0.0
        %357 = vmatprep.subr.mxu0 0.0
        %358 = vmatpush2.msra.mxu0 0.0
        %359 = vmatprep.subr.mxu0 0.0
        %360 = vmatpush2.msra.mxu0 0.0
        %361 = vmatprep.subr.mxu0 0.0
        %362 = vmatpush2.msra.mxu0 0.0
        %363 = vmatprep.subr.mxu0 0.0
        %364 = vmatpush2.msra.mxu0 0.0
        %365 = vmatprep.subr.mxu0 0.0
        %366 = vmatpush2.msra.mxu0 0.0
        %367 = vmatprep.subr.mxu0 0.0
        %368 = vmatpush2.msra.mxu0 0.0
        %369 = vmatprep.subr.mxu0 0.0
        %370 = vmatpush2.msra.mxu0 0.0
        %371 = vmatprep.subr.mxu0 0.0
        %372 = vmatpush2.msra.mxu0 0.0
        %373 = vmatprep.subr.mxu0 0.0
        %374 = vmatpush2.msra.mxu0 0.0
        %375 = vmatprep.subr.mxu0 0.0
        %376 = vmatpush2.msra.mxu0 0.0
        %377 = vmatprep.subr.mxu0 0.0
        %378 = vmatpush2.msra.mxu0 0.0
        %379 = vmatprep.subr.mxu0 0.0
        %380 = vmatpush2.msra.mxu0 %v306
        %381 = vmatprep.subr.mxu0 0.0
        %382 = vmatpush2.msra.mxu0 %v305
        %383 = vmatprep.mubr.f32.mxu0 %v317
        %384 = vmatmul.mubr.f32.gmra.mxu0 %v288
        %v385 = vpop.f32.mrf.mxu0
        %v386 = vadd.f32 %v312, %v385
        %v387 = vpop.f32.mrf.mxu0
        %388 = vdwg.mxu0
        %vm389 = vcmask 27648
        %390 = vst.msk [vmem:[%s275] sm:$0xf] %vm389, %v386
        %392 = vrot.lane.b32.xlu0 %v386, 124
        %v393 = vpop.permute.xlu0 %392
        %s395 = scalar_lea.vmem %s275, 4 [#allocation2]
        %396 = vst.msk [vmem:[%s395] sm:$0xf] %vm389, %v393
        %397 = vrot.lane.b32.xlu0 %v386, 120
        %v398 = vpop.permute.xlu0 %397
        %s400 = scalar_lea.vmem %s275, 8 [#allocation2]
        %401 = vst.msk [vmem:[%s400] sm:$0xf] %vm389, %v398
        %402 = vrot.lane.b32.xlu0 %v386, 116
        %v403 = vpop.permute.xlu0 %402
        %s405 = scalar_lea.vmem %s275, 12 [#allocation2]
        %406 = vst.msk [vmem:[%s405] sm:$0xf] %vm389, %v403
        %v407 = vld [vmem:[%s4] sm:$0xff]
        %v408 = vld [vmem:[%s4 + $0x8] sm:$0xff]
        %v409 = vld [vmem:[%s4 + $0x10] sm:$0xff]
        %v410 = vld [vmem:[%s4 + $0x18] sm:$0xff]
        %v411 = vsel %vm316, %v386, 0
        %413 = vmatprep.subr.mxu0 0.0
        %414 = vmatpush1.msra.mxu0 0.0
        %415 = vmatprep.subr.mxu0 0.0
        %416 = vmatpush1.msra.mxu0 0.0
        %417 = vmatprep.subr.mxu0 0.0
        %418 = vmatpush1.msra.mxu0 0.0
        %419 = vmatprep.subr.mxu0 0.0
        %420 = vmatpush1.msra.mxu0 0.0
        %421 = vmatprep.subr.mxu0 0.0
        %422 = vmatpush1.msra.mxu0 0.0
        %423 = vmatprep.subr.mxu0 0.0
        %424 = vmatpush1.msra.mxu0 0.0
        %425 = vmatprep.subr.mxu0 0.0
        %426 = vmatpush1.msra.mxu0 0.0
        %427 = vmatprep.subr.mxu0 0.0
        %428 = vmatpush1.msra.mxu0 0.0
        %429 = vmatprep.subr.mxu0 0.0
        %430 = vmatpush1.msra.mxu0 0.0
        %431 = vmatprep.subr.mxu0 0.0
        %432 = vmatpush1.msra.mxu0 0.0
        %433 = vmatprep.subr.mxu0 0.0
        %434 = vmatpush1.msra.mxu0 0.0
        %435 = vmatprep.subr.mxu0 0.0
        %436 = vmatpush1.msra.mxu0 0.0
        %437 = vmatprep.subr.mxu0 0.0
        %438 = vmatpush1.msra.mxu0 0.0
        %439 = vmatprep.subr.mxu0 0.0
        %440 = vmatpush1.msra.mxu0 0.0
        %441 = vmatprep.subr.mxu0 %v410
        %442 = vmatpush1.msra.mxu0 %v409
        %443 = vmatprep.subr.mxu0 %v408
        %444 = vmatpush1.msra.mxu0 %v407
        %445 = vmatprep.subr.mxu0 0.0
        %446 = vmatpush2.msra.mxu0 0.0
        %447 = vmatprep.subr.mxu0 0.0
        %448 = vmatpush2.msra.mxu0 0.0
        %449 = vmatprep.subr.mxu0 0.0
        %450 = vmatpush2.msra.mxu0 0.0
        %451 = vmatprep.subr.mxu0 0.0
        %452 = vmatpush2.msra.mxu0 0.0
        %453 = vmatprep.subr.mxu0 0.0
        %454 = vmatpush2.msra.mxu0 0.0
        %455 = vmatprep.subr.mxu0 0.0
        %456 = vmatpush2.msra.mxu0 0.0
        %457 = vmatprep.subr.mxu0 0.0
        %458 = vmatpush2.msra.mxu0 0.0
        %459 = vmatprep.subr.mxu0 0.0
        %460 = vmatpush2.msra.mxu0 0.0
        %461 = vmatprep.subr.mxu0 0.0
        %462 = vmatpush2.msra.mxu0 0.0
        %463 = vmatprep.subr.mxu0 0.0
        %464 = vmatpush2.msra.mxu0 0.0
        %465 = vmatprep.subr.mxu0 0.0
        %466 = vmatpush2.msra.mxu0 0.0
        %467 = vmatprep.subr.mxu0 0.0
        %468 = vmatpush2.msra.mxu0 0.0
        %469 = vmatprep.subr.mxu0 0.0
        %470 = vmatpush2.msra.mxu0 0.0
        %471 = vmatprep.subr.mxu0 0.0
        %472 = vmatpush2.msra.mxu0 0.0
        %473 = vmatprep.subr.mxu0 0.0
        %474 = vmatpush2.msra.mxu0 0.0
        %475 = vmatprep.subr.mxu0 0.0
        %476 = vmatpush2.msra.mxu0 0.0
        %477 = vmatprep.mubr.f32.mxu0 0.0
        %478 = vmatmul.mubr.f32.gmra.mxu0 %v411
        %v479 = vpop.f32.mrf.mxu0
        %v480 = vadd.f32 0.0, %v479
        %v481 = vpop.f32.mrf.mxu0
        %v482 = vadd.f32 0.0, %v481
        %483 = vdwg.mxu0
        %v484 = vld [vmem:[%s5] sm:$0xff]
        %v485 = vld [vmem:[%s5 + $0x8] sm:$0xff]
        %s486 = scalar_lea.vmem %s5, 16
        %v487 = vld [vmem:[%s486] sm:$0xff]
        %v488 = vld [vmem:[%s486 + $0x8] sm:$0xff]
        %490 = vrot.lane.b32.xlu0 %v480, 64
        %v491 = vpop.permute.xlu0 %490
        %vm492 = vcmask 31744
        %v494 = vsel %vm492, %v487, 0
        %v497 = vsel %vm492, %v488, 0
        %vm499 = vcmask 1043456
        %v500 = vsel %vm499, %v491, 0
        %502 = vmatprep.subr.mxu0 0.0
        %503 = vmatpush1.msra.mxu0 0.0
        %504 = vmatprep.subr.mxu0 0.0
        %505 = vmatpush1.msra.mxu0 0.0
        %506 = vmatprep.subr.mxu0 0.0
        %507 = vmatpush1.msra.mxu0 0.0
        %508 = vmatprep.subr.mxu0 0.0
        %509 = vmatpush1.msra.mxu0 0.0
        %510 = vmatprep.subr.mxu0 0.0
        %511 = vmatpush1.msra.mxu0 0.0
        %512 = vmatprep.subr.mxu0 0.0
        %513 = vmatpush1.msra.mxu0 0.0
        %514 = vmatprep.subr.mxu0 0.0
        %515 = vmatpush1.msra.mxu0 0.0
        %516 = vmatprep.subr.mxu0 0.0
        %517 = vmatpush1.msra.mxu0 0.0
        %518 = vmatprep.subr.mxu0 0.0
        %519 = vmatpush1.msra.mxu0 0.0
        %520 = vmatprep.subr.mxu0 0.0
        %521 = vmatpush1.msra.mxu0 0.0
        %522 = vmatprep.subr.mxu0 0.0
        %523 = vmatpush1.msra.mxu0 0.0
        %524 = vmatprep.subr.mxu0 0.0
        %525 = vmatpush1.msra.mxu0 0.0
        %526 = vmatprep.subr.mxu0 0.0
        %527 = vmatpush1.msra.mxu0 0.0
        %528 = vmatprep.subr.mxu0 0.0
        %529 = vmatpush1.msra.mxu0 0.0
        %530 = vmatprep.subr.mxu0 0.0
        %531 = vmatpush1.msra.mxu0 0.0
        %532 = vmatprep.subr.mxu0 0.0
        %533 = vmatpush1.msra.mxu0 %v500
        %534 = vmatprep.subr.mxu0 0.0
        %535 = vmatpush2.msra.mxu0 0.0
        %536 = vmatprep.subr.mxu0 0.0
        %537 = vmatpush2.msra.mxu0 0.0
        %538 = vmatprep.subr.mxu0 0.0
        %539 = vmatpush2.msra.mxu0 0.0
        %540 = vmatprep.subr.mxu0 0.0
        %541 = vmatpush2.msra.mxu0 0.0
        %542 = vmatprep.subr.mxu0 0.0
        %543 = vmatpush2.msra.mxu0 0.0
        %544 = vmatprep.subr.mxu0 0.0
        %545 = vmatpush2.msra.mxu0 0.0
        %546 = vmatprep.subr.mxu0 0.0
        %547 = vmatpush2.msra.mxu0 0.0
        %548 = vmatprep.subr.mxu0 0.0
        %549 = vmatpush2.msra.mxu0 0.0
        %550 = vmatprep.subr.mxu0 0.0
        %551 = vmatpush2.msra.mxu0 0.0
        %552 = vmatprep.subr.mxu0 0.0
        %553 = vmatpush2.msra.mxu0 0.0
        %554 = vmatprep.subr.mxu0 0.0
        %555 = vmatpush2.msra.mxu0 0.0
        %556 = vmatprep.subr.mxu0 0.0
        %557 = vmatpush2.msra.mxu0 0.0
        %558 = vmatprep.subr.mxu0 0.0
        %559 = vmatpush2.msra.mxu0 0.0
        %560 = vmatprep.subr.mxu0 0.0
        %561 = vmatpush2.msra.mxu0 0.0
        %562 = vmatprep.subr.mxu0 0.0
        %563 = vmatpush2.msra.mxu0 0.0
        %564 = vmatprep.subr.mxu0 0.0
        %565 = vmatpush2.msra.mxu0 0.0
        %566 = vmatprep.mubr.f32.mxu0 0.0
        %567 = vmatmul.mubr.f32.gmra.mxu0 %v494
        %v568 = vpop.f32.mrf.mxu0
        %v569 = vadd.f32 0.0, %v568
        %v570 = vpop.f32.mrf.mxu0
        %571 = vmatprep.mubr.f32.mxu0 0.0
        %572 = vmatmul.mubr.f32.gmra.mxu0 %v497
        %v573 = vpop.f32.mrf.mxu0
        %v574 = vadd.f32 0.0, %v573
        %v575 = vpop.f32.mrf.mxu0
        %576 = vdwg.mxu0
        %v578 = vsel %vm492, %v484, 0
        %v581 = vsel %vm492, %v485, 0
        %v583 = vsel %vm499, %v480, 0
        %585 = vmatprep.subr.mxu0 0.0
        %586 = vmatpush1.msra.mxu0 0.0
        %587 = vmatprep.subr.mxu0 0.0
        %588 = vmatpush1.msra.mxu0 0.0
        %589 = vmatprep.subr.mxu0 0.0
        %590 = vmatpush1.msra.mxu0 0.0
        %591 = vmatprep.subr.mxu0 0.0
        %592 = vmatpush1.msra.mxu0 0.0
        %593 = vmatprep.subr.mxu0 0.0
        %594 = vmatpush1.msra.mxu0 0.0
        %595 = vmatprep.subr.mxu0 0.0
        %596 = vmatpush1.msra.mxu0 0.0
        %597 = vmatprep.subr.mxu0 0.0
        %598 = vmatpush1.msra.mxu0 0.0
        %599 = vmatprep.subr.mxu0 0.0
        %600 = vmatpush1.msra.mxu0 0.0
        %601 = vmatprep.subr.mxu0 0.0
        %602 = vmatpush1.msra.mxu0 0.0
        %603 = vmatprep.subr.mxu0 0.0
        %604 = vmatpush1.msra.mxu0 0.0
        %605 = vmatprep.subr.mxu0 0.0
        %606 = vmatpush1.msra.mxu0 0.0
        %607 = vmatprep.subr.mxu0 0.0
        %608 = vmatpush1.msra.mxu0 0.0
        %609 = vmatprep.subr.mxu0 0.0
        %610 = vmatpush1.msra.mxu0 0.0
        %611 = vmatprep.subr.mxu0 0.0
        %612 = vmatpush1.msra.mxu0 0.0
        %613 = vmatprep.subr.mxu0 0.0
        %614 = vmatpush1.msra.mxu0 0.0
        %615 = vmatprep.subr.mxu0 0.0
        %616 = vmatpush1.msra.mxu0 %v583
        %617 = vmatprep.subr.mxu0 0.0
        %618 = vmatpush2.msra.mxu0 0.0
        %619 = vmatprep.subr.mxu0 0.0
        %620 = vmatpush2.msra.mxu0 0.0
        %621 = vmatprep.subr.mxu0 0.0
        %622 = vmatpush2.msra.mxu0 0.0
        %623 = vmatprep.subr.mxu0 0.0
        %624 = vmatpush2.msra.mxu0 0.0
        %625 = vmatprep.subr.mxu0 0.0
        %626 = vmatpush2.msra.mxu0 0.0
        %627 = vmatprep.subr.mxu0 0.0
        %628 = vmatpush2.msra.mxu0 0.0
        %629 = vmatprep.subr.mxu0 0.0
        %630 = vmatpush2.msra.mxu0 0.0
        %631 = vmatprep.subr.mxu0 0.0
        %632 = vmatpush2.msra.mxu0 0.0
        %633 = vmatprep.subr.mxu0 0.0
        %634 = vmatpush2.msra.mxu0 0.0
        %635 = vmatprep.subr.mxu0 0.0
        %636 = vmatpush2.msra.mxu0 0.0
        %637 = vmatprep.subr.mxu0 0.0
        %638 = vmatpush2.msra.mxu0 0.0
        %639 = vmatprep.subr.mxu0 0.0
        %640 = vmatpush2.msra.mxu0 0.0
        %641 = vmatprep.subr.mxu0 0.0
        %642 = vmatpush2.msra.mxu0 0.0
        %643 = vmatprep.subr.mxu0 0.0
        %644 = vmatpush2.msra.mxu0 0.0
        %645 = vmatprep.subr.mxu0 0.0
        %646 = vmatpush2.msra.mxu0 0.0
        %647 = vmatprep.subr.mxu0 0.0
        %648 = vmatpush2.msra.mxu0 0.0
        %649 = vmatprep.mubr.f32.mxu0 0.0
        %650 = vmatmul.mubr.f32.gmra.mxu0 %v578
        %v651 = vpop.f32.mrf.mxu0
        %v652 = vadd.f32 %v569, %v651
        %v653 = vpop.f32.mrf.mxu0
        %654 = vmatprep.mubr.f32.mxu0 0.0
        %655 = vmatmul.mubr.f32.gmra.mxu0 %v581
        %v656 = vpop.f32.mrf.mxu0
        %v657 = vadd.f32 %v574, %v656
        %v658 = vpop.f32.mrf.mxu0
        %659 = vdwg.mxu0
        %s660 = scalar_lea.vmem %s5, 32
        %v661 = vld [vmem:[%s660] sm:$0xff]
        %v662 = vld [vmem:[%s660 + $0x8] sm:$0xff]
        %v664 = vsel %vm492, %v661, 0
        %v667 = vsel %vm492, %v662, 0
        %v670 = vsel %vm499, %v482, 0
        %672 = vmatprep.subr.mxu0 0.0
        %673 = vmatpush1.msra.mxu0 0.0
        %674 = vmatprep.subr.mxu0 0.0
        %675 = vmatpush1.msra.mxu0 0.0
        %676 = vmatprep.subr.mxu0 0.0
        %677 = vmatpush1.msra.mxu0 0.0
        %678 = vmatprep.subr.mxu0 0.0
        %679 = vmatpush1.msra.mxu0 0.0
        %680 = vmatprep.subr.mxu0 0.0
        %681 = vmatpush1.msra.mxu0 0.0
        %682 = vmatprep.subr.mxu0 0.0
        %683 = vmatpush1.msra.mxu0 0.0
        %684 = vmatprep.subr.mxu0 0.0
        %685 = vmatpush1.msra.mxu0 0.0
        %686 = vmatprep.subr.mxu0 0.0
        %687 = vmatpush1.msra.mxu0 0.0
        %688 = vmatprep.subr.mxu0 0.0
        %689 = vmatpush1.msra.mxu0 0.0
        %690 = vmatprep.subr.mxu0 0.0
        %691 = vmatpush1.msra.mxu0 0.0
        %692 = vmatprep.subr.mxu0 0.0
        %693 = vmatpush1.msra.mxu0 0.0
        %694 = vmatprep.subr.mxu0 0.0
        %695 = vmatpush1.msra.mxu0 0.0
        %696 = vmatprep.subr.mxu0 0.0
        %697 = vmatpush1.msra.mxu0 0.0
        %698 = vmatprep.subr.mxu0 0.0
        %699 = vmatpush1.msra.mxu0 0.0
        %700 = vmatprep.subr.mxu0 0.0
        %701 = vmatpush1.msra.mxu0 0.0
        %702 = vmatprep.subr.mxu0 0.0
        %703 = vmatpush1.msra.mxu0 %v670
        %704 = vmatprep.subr.mxu0 0.0
        %705 = vmatpush2.msra.mxu0 0.0
        %706 = vmatprep.subr.mxu0 0.0
        %707 = vmatpush2.msra.mxu0 0.0
        %708 = vmatprep.subr.mxu0 0.0
        %709 = vmatpush2.msra.mxu0 0.0
        %710 = vmatprep.subr.mxu0 0.0
        %711 = vmatpush2.msra.mxu0 0.0
        %712 = vmatprep.subr.mxu0 0.0
        %713 = vmatpush2.msra.mxu0 0.0
        %714 = vmatprep.subr.mxu0 0.0
        %715 = vmatpush2.msra.mxu0 0.0
        %716 = vmatprep.subr.mxu0 0.0
        %717 = vmatpush2.msra.mxu0 0.0
        %718 = vmatprep.subr.mxu0 0.0
        %719 = vmatpush2.msra.mxu0 0.0
        %720 = vmatprep.subr.mxu0 0.0
        %721 = vmatpush2.msra.mxu0 0.0
        %722 = vmatprep.subr.mxu0 0.0
        %723 = vmatpush2.msra.mxu0 0.0
        %724 = vmatprep.subr.mxu0 0.0
        %725 = vmatpush2.msra.mxu0 0.0
        %726 = vmatprep.subr.mxu0 0.0
        %727 = vmatpush2.msra.mxu0 0.0
        %728 = vmatprep.subr.mxu0 0.0
        %729 = vmatpush2.msra.mxu0 0.0
        %730 = vmatprep.subr.mxu0 0.0
        %731 = vmatpush2.msra.mxu0 0.0
        %732 = vmatprep.subr.mxu0 0.0
        %733 = vmatpush2.msra.mxu0 0.0
        %734 = vmatprep.subr.mxu0 0.0
        %735 = vmatpush2.msra.mxu0 0.0
        %736 = vmatprep.mubr.f32.mxu0 0.0
        %737 = vmatmul.mubr.f32.gmra.mxu0 %v664
        %v738 = vpop.f32.mrf.mxu0
        %v739 = vadd.f32 0.0, %v738
        %v740 = vpop.f32.mrf.mxu0
        %741 = vmatprep.mubr.f32.mxu0 0.0
        %742 = vmatmul.mubr.f32.gmra.mxu0 %v667
        %v743 = vpop.f32.mrf.mxu0
        %v744 = vadd.f32 0.0, %v743
        %v745 = vpop.f32.mrf.mxu0
        %746 = vdwg.mxu0
        %v747 = vadd.f32 %v652, %v739
        %v748 = vadd.f32 %v657, %v744
        %v749 = vld [vmem:[%s3] sm:$0x1]
        %v751 = vlaneseq
        %v752 = vshrl.u32 %v751, 7
        %v753 = vsub.s32 0, %v752
        %v754 = vrot.slane %v749, %v753
        %v756 = vadd.f32 %v747, %v754
        %v757 = vadd.f32 %v748, %v754
        %758 = vst.msk [vmem:[%s282] sm:$0xff] %vm316, %v756
        %759 = vst.msk [vmem:[%s282 + $0x8] sm:$0xff] %vm316, %v757
        %762 = vrot.lane.b32.xlu0 %v756, 112
        %v763 = vpop.permute.xlu0 %762
        %764 = vrot.lane.b32.xlu0 %v757, 112
        %v765 = vpop.permute.xlu0 %764
        %s768 = scalar_lea.vmem %s282, 16 [#allocation4]
        %769 = vst.msk [vmem:[%s768] sm:$0xff] %vm316, %v763
        %770 = vst.msk [vmem:[%s768 + $0x8] sm:$0xff] %vm316, %v765
        %771 = vrot.lane.b32.xlu0 %v756, 96
        %v772 = vpop.permute.xlu0 %771
        %773 = vrot.lane.b32.xlu0 %v757, 96
        %v774 = vpop.permute.xlu0 %773
        %s777 = scalar_lea.vmem %s282, 32 [#allocation4]
        %778 = vst.msk [vmem:[%s777] sm:$0xff] %vm316, %v772
        %779 = vst.msk [vmem:[%s777 + $0x8] sm:$0xff] %vm316, %v774
        %780 = vrot.lane.b32.xlu0 %v756, 80
        %v781 = vpop.permute.xlu0 %780
        %782 = vrot.lane.b32.xlu0 %v757, 80
        %v783 = vpop.permute.xlu0 %782
        %s786 = scalar_lea.vmem %s282, 48 [#allocation4]
        %787 = vst.msk [vmem:[%s786] sm:$0xff] %vm316, %v781
        %788 = vst.msk [vmem:[%s786 + $0x8] sm:$0xff] %vm316, %v783
        %s789 = sand.u32 %s164, 1
        %s790 = scalar_lea.sflag [#allocation3], %s789
        %s791 = sand.u32 %s164, 1
        %s792 = smul.addr %s791, 16
        %s793 = scalar_lea.vmem [#allocation2], %s792
        %s794 = sand.u32 %s190, 1
        %s795 = scalar_lea.sflag [#allocation5], %s794
        %s796 = sand.u32 %s190, 1
        %s797 = smul.addr %s796, 64
        %s798 = scalar_lea.vmem [#allocation4], %s797
        // Predicated region
        $region45: #{measure_net_forward.1} parent=43 // pred_check
          %p799 = pneg %p174
        $region46: #{measure_net_forward.1} parent=43 // pred_check_branch
          %801 = sbr.rel (%p799) target = $region48
        $region47: #{measure_net_forward.1} parent=43 // pred_region
          %s803 = ssub.s32 256, 256
          %804 = vsyncadd %s790, %s803
          %s805 = smul.addr %s25, 4
          %s806 = smul.addr %s805, 64
          %s807 = scalar_lea.hbm %s6, %s806
          %s808 = sshll.u32 %s793, 4
          %s809 = int_to_ptr.vmem [resolvable:$true] %s808
          %814 = dma.vmem_to_hbm [thread:$0]  %s809, 256, %s807, %s790, 64, 64, 4
        $region48: #{measure_net_forward.1} parent=43 // pred_fallthru
          _
        // Predicated region
        $region49: #{measure_net_forward.1} parent=43 // pred_check
          %p815 = pneg %p200
        $region50: #{measure_net_forward.1} parent=43 // pred_check_branch
          %817 = sbr.rel (%p815) target = $region52
        $region51: #{measure_net_forward.1} parent=43 // pred_region
          %s819 = ssub.s32 1024, 1024
          %820 = vsyncadd %s795, %s819
          %s821 = smul.addr %s25, 8
          %s822 = smul.addr %s821, 128
          %s823 = scalar_lea.hbm %s7, %s822
          %s824 = sshll.u32 %s798, 4
          %s825 = int_to_ptr.vmem [resolvable:$true] %s824
          %830 = dma.vmem_to_hbm [thread:$0]  %s825, 1024, %s823, %s795, 128, 128, 8
        $region52: #{measure_net_forward.1} parent=43 // pred_fallthru
          _
      $region44: #{measure_net_forward.1} parent=5 // pred_fallthru
        _
      %p831 = scmp.le.s32.totalorder 2, %s20
      // Predicated region
      $region53: #{measure_net_forward.1} parent=5 // pred_check
        %p832 = pneg %p831
      $region54: #{measure_net_forward.1} parent=5 // pred_check_branch
        %834 = sbr.rel (%p832) target = $region56
      $region55: #{measure_net_forward.1} parent=5 // pred_region
        %s835 = ssub.s32 %s20, 2
        // Predicated region
        $region57: #{measure_net_forward.1} parent=55 // pred_check
          %p836 = pneg %p180
        $region58: #{measure_net_forward.1} parent=55 // pred_check_branch
          %838 = sbr.rel (%p836) target = $region60
        $region59: #{measure_net_forward.1} parent=55 // pred_region
          %s839 = sand.u32 %s165, 1
          %s840 = scalar_lea.sflag [#allocation3], %s839
          %s841 = sand.u32 %s165, 1
          %s842 = smul.addr %s841, 16
          %s843 = scalar_lea.vmem [#allocation2], %s842
          %844 = dma.done %s840, 256
        $region60: #{measure_net_forward.1} parent=55 // pred_fallthru
          _
        // Predicated region
        $region61: #{measure_net_forward.1} parent=55 // pred_check
          %p845 = pneg %p206
        $region62: #{measure_net_forward.1} parent=55 // pred_check_branch
          %847 = sbr.rel (%p845) target = $region64
        $region63: #{measure_net_forward.1} parent=55 // pred_region
          %s848 = sand.u32 %s191, 1
          %s849 = scalar_lea.sflag [#allocation5], %s848
          %s850 = sand.u32 %s191, 1
          %s851 = smul.addr %s850, 64
          %s852 = scalar_lea.vmem [#allocation4], %s851
          %853 = dma.done %s849, 1024
        $region64: #{measure_net_forward.1} parent=55 // pred_fallthru
          _
      $region56: #{measure_net_forward.1} parent=5 // pred_fallthru
        _
    $region6: #{measure_net_forward.1} parent=1 // loop_footer
      %s24 = sadd.s32 1, %s20
    $region7: #{measure_net_forward.1} parent=1 // loop_footer_branch
      %19 = sbr.rel target = $region3
    $region8: #{measure_net_forward.1} parent=1 // loop_exit
      _
    %854 = vsyncpa [#allocation3], 1
    %s855 = scalar_lea.sflag [#allocation3], 1
    %856 = vsyncpa %s855, 1
    %857 = vsyncpa [#allocation5], 1
    %s858 = scalar_lea.sflag [#allocation5], 1
    %859 = vsyncpa %s858, 1

</llo_original>
